<compile_context>
chip_gen: v7x
topology: tpu7x:2x2x1
jax: 0.10.0
libtpu: 0.0.40
codegen_flags: <defaults>
</compile_context>

<pallas_src>
import jax
import jax.numpy as jnp
from jax.experimental import pallas as pl
from jax.experimental.pallas import tpu as pltpu


# ----------------------------- Pallas kernel -------------------------------

def _premult_lora_matmul_kernel(b_ref, a_ref, w_ref, bias_ref, p_ref, o_ref):
    """One grid step: out = ((B_cat @ A_cat) @ W_flat) @ p + bias."""
    # Reassociated LoRA pre-multiplication (tiny, recomputed per step so the
    # grid axis can stay "parallel"): (O,2r)@(2r,O) -> (O,O) -> (O,K).
    mix = jnp.dot(b_ref[...], a_ref[...], preferred_element_type=jnp.float32)   # (O, O)
    adapted = jnp.dot(mix, w_ref[...], preferred_element_type=jnp.float32)      # (O, K)
    # Main matmul, contracting K; output lane dim is a multiple of 128 (dense vst).
    acc = jnp.dot(adapted, p_ref[...], preferred_element_type=jnp.float32)      # (O, L)
    o_ref[...] = (acc + bias_ref[...]).astype(o_ref.dtype)


def fused_premult_lora(b_cat, a_cat, w_flat, bias_col, rhs):
    """rhs: (N, K, L) with L a multiple of 128 -> out (N, O, L)."""
    N, K, L = rhs.shape
    O = w_flat.shape[0]
    return pl.pallas_call(
        _premult_lora_matmul_kernel,
        out_shape=jax.ShapeDtypeStruct((N, O, L), rhs.dtype),
        grid=(N,),
        in_specs=[
            pl.BlockSpec(b_cat.shape, lambda n: (0, 0)),        # (O, 2r)
            pl.BlockSpec(a_cat.shape, lambda n: (0, 0)),        # (2r, O)
            pl.BlockSpec(w_flat.shape, lambda n: (0, 0)),       # (O, K)
            pl.BlockSpec(bias_col.shape, lambda n: (0, 0)),     # (O, 1)
            pl.BlockSpec((None, K, L), lambda n: (n, 0, 0)),    # per-batch rhs tile
        ],
        out_specs=pl.BlockSpec((None, O, L), lambda n: (n, 0, 0)),
        compiler_params=pltpu.CompilerParams(
            dimension_semantics=("parallel",)),
    )(b_cat, a_cat, w_flat, bias_col, rhs)


# ------------------------------- JAX glue ----------------------------------

def im2col_nchw_t(x, k, padding):
    """NCHW -> (N, C*k*k, Ho*Wo) patches, K-major (matches W.view(O,-1))."""
    N, C, H, W = x.shape
    Ho = H + 2 * padding - k + 1
    Wo = W + 2 * padding - k + 1
    xp = jnp.pad(x, ((0, 0), (0, 0), (padding, padding), (padding, padding)))
    cols = jnp.stack(
        [xp[:, :, di:di + Ho, dj:dj + Wo]
         for di in range(k) for dj in range(k)],
        axis=2,
    )                                              # (N, C, k*k, Ho, Wo)
    return cols.reshape(N, C * k * k, Ho * Wo), (N, Ho, Wo)


def _lane_pad(a, mult=128):
    pad = (-a.shape[-1]) % mult
    if pad:
        a = jnp.pad(a, ((0, 0), (0, 0), (0, pad)))
    return a


def constraint_premult_lora_conv_forward(x, w, bias, b1, a1, b2, a2, *, padding=1):
    """nn.Conv2d branch (stride=1)."""
    O, C, kh, kw = w.shape
    w_flat = w.reshape(O, C * kh * kw)
    a_cat = jnp.concatenate([a1, a2], axis=0)      # (2rkk, O)
    b_cat = jnp.concatenate([b1, b2], axis=1)      # (O, 2rkk)

    patches_t, (N, Ho, Wo) = im2col_nchw_t(x, kh, padding)   # (N, K, HW)
    HW = Ho * Wo
    patches_t = _lane_pad(patches_t)

    out = fused_premult_lora(b_cat, a_cat, w_flat, bias.reshape(O, 1), patches_t)
    return out[:, :, :HW].reshape(N, O, Ho, Wo)    # already NCHW — no transpose


def constraint_premult_lora_linear_forward(x, w, bias, b1, a1, b2, a2):
    """nn.Linear branch: F.linear(x, adapted_W, bias)."""
    O, I = w.shape
    B = x.shape[0]
    a_cat = jnp.concatenate([a1, a2], axis=0)      # (2r, O)
    b_cat = jnp.concatenate([b1, b2], axis=1)      # (O, 2r)
    xt = _lane_pad(x.T[None])                      # (1, I, Bp) — batch on lanes
    out = fused_premult_lora(b_cat, a_cat, w, bias.reshape(O, 1), xt)  # (1, O, Bp)
    return out[0, :, :B].T                         # (B, O)


# --------------------------------- main -------------------------------------

if __name__ == "__main__":
    key = jax.random.PRNGKey(0)
    k1, k2, k3, k4, k5, k6, k7, k8 = jax.random.split(key, 8)

    # ---------------- Conv2d branch: in=4, out=8, k=3, pad=1, rank=4 --------
    N, Cin, H, W = 2, 4, 16, 16
    Cout, ksz, rank = 8, 3, 4
    rkk = rank * ksz * ksz                                   # 36

    base_w = jax.random.normal(k1, (Cout, Cin, ksz, ksz), jnp.float32) * 0.1
    base_b = jax.random.normal(k2, (Cout,), jnp.float32) * 0.1

    # reset_parameters(): combined_B orthogonal (orthonormal rows), split,
    # A_i = pinv(B_i).
    G = jax.random.normal(k3, (2 * rkk, Cout), jnp.float32)
    q, _ = jnp.linalg.qr(G)                                  # orthonormal cols
    combined_B = q.T                                         # (Cout, 2*rkk)
    B_1, B_2 = combined_B[:, :rkk], combined_B[:, rkk:]
    A_1, A_2 = jnp.linalg.pinv(B_1), jnp.linalg.pinv(B_2)

    x = jax.random.normal(k4, (N, Cin, H, W), jnp.float32)

    out = constraint_premult_lora_conv_forward(
        x, base_w, base_b, B_1, A_1, B_2, A_2, padding=1)
    out = jax.block_until_ready(out)

    w_flat = base_w.reshape(Cout, -1)
    adapted_ref = (B_1 @ (A_1 @ w_flat) + B_2 @ (A_2 @ w_flat)).reshape(base_w.shape)
    ref = jax.lax.conv_general_dilated(
        x, adapted_ref, window_strides=(1, 1), padding=((1, 1), (1, 1)),
        dimension_numbers=("NCHW", "OIHW", "NCHW"),
    ) + base_b.reshape(1, Cout, 1, 1)

    assert out.shape == (N, Cout, H, W), out.shape
    assert jnp.allclose(out, ref, atol=1e-3, rtol=1e-3), float(
        jnp.max(jnp.abs(out - ref)))

    # ---------------- Linear branch: in=32, out=8, batch=8, rank=4 ----------
    Bn, In, On, rk = 8, 32, 8, 4
    lin_w = jax.random.normal(k5, (On, In), jnp.float32) * 0.1
    lin_b = jax.random.normal(k6, (On,), jnp.float32) * 0.1
    Gl = jax.random.normal(k7, (2 * rk, On), jnp.float32)
    ql, _ = jnp.linalg.qr(Gl)
    combined_Bl = ql.T                                       # (On, 2*rk)
    LB_1, LB_2 = combined_Bl[:, :rk], combined_Bl[:, rk:]
    LA_1, LA_2 = jnp.linalg.pinv(LB_1), jnp.linalg.pinv(LB_2)
    xl = jax.random.normal(k8, (Bn, In), jnp.float32)

    out_l = constraint_premult_lora_linear_forward(
        xl, lin_w, lin_b, LB_1, LA_1, LB_2, LA_2)
    out_l = jax.block_until_ready(out_l)

    adapted_l = LB_1 @ (LA_1 @ lin_w) + LB_2 @ (LA_2 @ lin_w)
    ref_l = xl @ adapted_l.T + lin_b
    assert out_l.shape == (Bn, On), out_l.shape
    assert jnp.allclose(out_l, ref_l, atol=1e-3, rtol=1e-3), float(
        jnp.max(jnp.abs(out_l - ref_l)))

    print("KERNEL_OK")
</pallas_src>

<mosaic_0001>
module attributes {stable_mosaic.version = 11 : i64} {
  func.func @_premult_lora_matmul_kernel(%arg0: i32, %arg1: memref<8x72xf32, #tpu.memory_space<vmem>>, %arg2: memref<72x8xf32, #tpu.memory_space<vmem>>, %arg3: memref<8x36xf32, #tpu.memory_space<vmem>>, %arg4: memref<8x1xf32, #tpu.memory_space<vmem>>, %arg5: memref<1x36x256xf32, #tpu.memory_space<vmem>>, %arg6: memref<1x8x256xf32, #tpu.memory_space<vmem>>) attributes {dimension_semantics = [#tpu.dimension_semantics<parallel>], iteration_bounds = array<i64: 2>, scalar_prefetch = 0 : i64, scratch_operands = 0 : i64, tpu.core_type = #tpu.core_type<tc>, window_params = [{pipeline_mode = #tpu.pipeline_mode<synchronous>, transform_indices = @transform_0, window_bounds = array<i64: 8, 72>}, {pipeline_mode = #tpu.pipeline_mode<synchronous>, transform_indices = @transform_1, window_bounds = array<i64: 72, 8>}, {pipeline_mode = #tpu.pipeline_mode<synchronous>, transform_indices = @transform_2, window_bounds = array<i64: 8, 36>}, {pipeline_mode = #tpu.pipeline_mode<synchronous>, transform_indices = @transform_3, window_bounds = array<i64: 8, 1>}, {transform_indices = @transform_4, window_bounds = array<i64: 1, 36, 256>}, {transform_indices = @transform_5, window_bounds = array<i64: 1, 8, 256>}]} {
    %c0 = arith.constant 0 : index
    %c0_0 = arith.constant 0 : index
    %0 = vector.load %arg1[%c0, %c0_0] : memref<8x72xf32, #tpu.memory_space<vmem>>, vector<8x72xf32>
    %c0_1 = arith.constant 0 : index
    %c0_2 = arith.constant 0 : index
    %1 = vector.load %arg2[%c0_1, %c0_2] : memref<72x8xf32, #tpu.memory_space<vmem>>, vector<72x8xf32>
    %cst = arith.constant dense<0.000000e+00> : vector<8x8xf32>
    %2 = tpu.matmul %0, %1, %cst {dimension_numbers = #tpu.dot_dimension_numbers<[1], [0], [0], [1], [0, 0, 1, 1], [], []>} : vector<8x72xf32>, vector<72x8xf32>, vector<8x8xf32> -> vector<8x8xf32>
    %c0_3 = arith.constant 0 : index
    %c0_4 = arith.constant 0 : index
    %3 = vector.load %arg3[%c0_3, %c0_4] : memref<8x36xf32, #tpu.memory_space<vmem>>, vector<8x36xf32>
    %cst_5 = arith.constant dense<0.000000e+00> : vector<8x36xf32>
    %4 = tpu.matmul %2, %3, %cst_5 {dimension_numbers = #tpu.dot_dimension_numbers<[1], [0], [0], [1], [0, 0, 1, 1], [], []>} : vector<8x8xf32>, vector<8x36xf32>, vector<8x36xf32> -> vector<8x36xf32>
    %c0_6 = arith.constant 0 : index
    %c0_7 = arith.constant 0 : index
    %c0_8 = arith.constant 0 : index
    %5 = vector.load %arg5[%c0_6, %c0_7, %c0_8] : memref<1x36x256xf32, #tpu.memory_space<vmem>>, vector<1x36x256xf32>
    %6 = vector.shape_cast %5 : vector<1x36x256xf32> to vector<36x256xf32>
    %cst_9 = arith.constant dense<0.000000e+00> : vector<8x256xf32>
    %7 = tpu.matmul %4, %6, %cst_9 {dimension_numbers = #tpu.dot_dimension_numbers<[1], [0], [0], [1], [0, 0, 1, 1], [], []>} : vector<8x36xf32>, vector<36x256xf32>, vector<8x256xf32> -> vector<8x256xf32>
    %c0_10 = arith.constant 0 : index
    %c0_11 = arith.constant 0 : index
    %8 = vector.load %arg4[%c0_10, %c0_11] : memref<8x1xf32, #tpu.memory_space<vmem>>, vector<8x1xf32>
    %9 = vector.broadcast %8 : vector<8x1xf32> to vector<8x256xf32>
    %10 = arith.addf %7, %9 : vector<8x256xf32>
    %c0_12 = arith.constant 0 : index
    %c0_13 = arith.constant 0 : index
    %c0_14 = arith.constant 0 : index
    %11 = vector.load %arg6[%c0_12, %c0_13, %c0_14] : memref<1x8x256xf32, #tpu.memory_space<vmem>>, vector<1x8x256xf32>
    %12 = vector.shape_cast %11 : vector<1x8x256xf32> to vector<8x256xf32>
    %13 = vector.shape_cast %10 : vector<8x256xf32> to vector<1x8x256xf32>
    tpu.vector_store %arg6[%c0_12, %c0_13, %c0_14], %13 {strides = array<i32>} : memref<1x8x256xf32, #tpu.memory_space<vmem>>, vector<1x8x256xf32>,
    return
  }
  func.func @transform_0(%arg0: i32) -> (i32, i32) {
    %c0_i32 = arith.constant 0 : i32
    %c0_i32_0 = arith.constant 0 : i32
    %c0_i32_1 = arith.constant 0 : i32
    return %c0_i32, %c0_i32_0 : i32, i32
  }
  func.func @transform_1(%arg0: i32) -> (i32, i32) {
    %c0_i32 = arith.constant 0 : i32
    %c0_i32_0 = arith.constant 0 : i32
    %c0_i32_1 = arith.constant 0 : i32
    return %c0_i32, %c0_i32_0 : i32, i32
  }
  func.func @transform_2(%arg0: i32) -> (i32, i32) {
    %c0_i32 = arith.constant 0 : i32
    %c0_i32_0 = arith.constant 0 : i32
    %c0_i32_1 = arith.constant 0 : i32
    return %c0_i32, %c0_i32_0 : i32, i32
  }
  func.func @transform_3(%arg0: i32) -> (i32, i32) {
    %c0_i32 = arith.constant 0 : i32
    %c0_i32_0 = arith.constant 0 : i32
    %c0_i32_1 = arith.constant 0 : i32
    return %c0_i32, %c0_i32_0 : i32, i32
  }
  func.func @transform_4(%arg0: i32) -> (i32, i32, i32) {
    %c0_i32 = arith.constant 0 : i32
    %c0_i32_0 = arith.constant 0 : i32
    %c0_i32_1 = arith.constant 0 : i32
    return %arg0, %c0_i32, %c0_i32_0 : i32, i32, i32
  }
  func.func @transform_5(%arg0: i32) -> (i32, i32, i32) {
    %c0_i32 = arith.constant 0 : i32
    %c0_i32_0 = arith.constant 0 : i32
    %c0_i32_1 = arith.constant 0 : i32
    return %arg0, %c0_i32, %c0_i32_0 : i32, i32, i32
  }
}

</mosaic_0001>

<llo_original>
// kernel: tpu_custom_call.1
$region0: #{tpu_custom_call.1}
  #allocation0 [shape = 'u32[]', space=smem, size = 0x4, offset = 0x4, fixed_abs, tag = 'smem constant byte address 0x4 - core index']
  #allocation1 [shape = 'u32[144,128]{1,0:T(1,128)}', space=vmem, size = 0x12000, scoped, tag = 'internal scratch']
  %s0 = inlined_call_operand.vmem [shape: f32[8,72], index: 0, kind: input, shape index: {}]
  %s1 = inlined_call_operand.vmem [shape: f32[72,8], index: 1, kind: input, shape index: {}]
  %s2 = inlined_call_operand.vmem [shape: f32[8,36], index: 2, kind: input, shape index: {}]
  %s3 = inlined_call_operand.vmem [shape: f32[8,1], index: 3, kind: input, shape index: {}]
  %s4 = inlined_call_operand.vmem [shape: f32[2,36,256], index: 4, kind: input, shape index: {}]
  %s5 = inlined_call_operand.hbm [shape: f32[2,8,256], index: 5, kind: output, shape index: {}]
  %s6 = sld [smem:[#allocation0]]
  $region53: #{tpu_custom_call.1} parent=0
    _
  %s8 = ssub.s32 1, %s6
  %s9 = scalar_select 0, %s8, %s6
  $region1: #{tpu_custom_call.1} parent=0
    #allocation2 [shape = 'u8[16384]{0}', space=vmem, size = 0x4000, scoped, tag = 'output window, operand 0']
    #allocation3 [shape = 's32[2]{0}', space=sflag, size = 0x8, scoped, tag = 'scoped memory for tpu_custom_call.1']
    %10 = vsyncpa [#allocation3], 0
    %s11 = scalar_lea.sflag [#allocation3], 1
    %12 = vsyncpa %s11, 0
    loop: start=0, step=1, limit=4
    $region2: #{tpu_custom_call.1} parent=1 // loop_pre_header
      _
    $region3: #{tpu_custom_call.1} parent=1 // loop_header
      %s14 = sphi 0, %s18
      %p15 = scmp.ge.s32.totalorder %s14, 4
      %s22 = sphi 0, %s22
      %s24 = sphi 0, %s22
      %s25 = sphi 0, %s24
      %s39 = sphi 0, %s25
      %s43 = sphi 0, %s43
      %s45 = sphi 0, %s43
      %s46 = sphi 0, %s45
      %s60 = sphi 0, %s46
      %s64 = sphi 0, %s64
      %s66 = sphi 0, %s64
      %s67 = sphi 0, %s66
      %s81 = sphi 0, %s67
      %s85 = sphi 0, %s85
      %s87 = sphi 0, %s85
      %s88 = sphi 0, %s87
      %s102 = sphi 0, %s88
      %s108 = sphi 0, %s110
      %s111 = sphi 0, %s108
      %s112 = sphi 0, %s111
      %s128 = sphi 0, %s112
      %s134 = sphi 0, %s136
      %s137 = sphi 0, %s134
      %s138 = sphi 0, %s137
      %s154 = sphi 0, %s138
    $region4: #{tpu_custom_call.1} parent=1 // loop_header_branch
      %17 = sbr.rel (%p15) target = $region8
    $region5: #{tpu_custom_call.1} parent=1 // loop_body
      %s19 = ssub.s32 %s14, 1
      %s20 = ssub.s32 %s14, 2
      %s21 = sadd.s32 %s14, 1
      %s23 = sadd.s32 %s22, 1
      %p26 = scmp.eq.s32.totalorder %s14, 1
      %p27 = scmp.ne.s32.totalorder %s22, %s24
      %p28 = scmp.eq.s32.totalorder %s14, 0
      %p29 = por %p27, %p28
      %p30 = scmp.ne.s32.totalorder %s22, %s24
      %p31 = scmp.eq.s32.totalorder %s19, 1
      %p32 = por %p30, %p31
      %p33 = scmp.ne.s32.totalorder %s24, %s25
      %p34 = scmp.eq.s32.totalorder %s19, 0
      %p35 = por %p33, %p34
      %p36 = scmp.ne.s32.totalorder %s24, %s25
      %p37 = scmp.eq.s32.totalorder %s20, 1
      %p38 = por %p36, %p37
      %p40 = scmp.ne.s32.totalorder %s25, %s39
      %p41 = scmp.eq.s32.totalorder %s20, 0
      %p42 = por %p40, %p41
      %s44 = sadd.s32 %s43, 1
      %p47 = scmp.eq.s32.totalorder %s14, 1
      %p48 = scmp.ne.s32.totalorder %s43, %s45
      %p49 = scmp.eq.s32.totalorder %s14, 0
      %p50 = por %p48, %p49
      %p51 = scmp.ne.s32.totalorder %s43, %s45
      %p52 = scmp.eq.s32.totalorder %s19, 1
      %p53 = por %p51, %p52
      %p54 = scmp.ne.s32.totalorder %s45, %s46
      %p55 = scmp.eq.s32.totalorder %s19, 0
      %p56 = por %p54, %p55
      %p57 = scmp.ne.s32.totalorder %s45, %s46
      %p58 = scmp.eq.s32.totalorder %s20, 1
      %p59 = por %p57, %p58
      %p61 = scmp.ne.s32.totalorder %s46, %s60
      %p62 = scmp.eq.s32.totalorder %s20, 0
      %p63 = por %p61, %p62
      %s65 = sadd.s32 %s64, 1
      %p68 = scmp.eq.s32.totalorder %s14, 1
      %p69 = scmp.ne.s32.totalorder %s64, %s66
      %p70 = scmp.eq.s32.totalorder %s14, 0
      %p71 = por %p69, %p70
      %p72 = scmp.ne.s32.totalorder %s64, %s66
      %p73 = scmp.eq.s32.totalorder %s19, 1
      %p74 = por %p72, %p73
      %p75 = scmp.ne.s32.totalorder %s66, %s67
      %p76 = scmp.eq.s32.totalorder %s19, 0
      %p77 = por %p75, %p76
      %p78 = scmp.ne.s32.totalorder %s66, %s67
      %p79 = scmp.eq.s32.totalorder %s20, 1
      %p80 = por %p78, %p79
      %p82 = scmp.ne.s32.totalorder %s67, %s81
      %p83 = scmp.eq.s32.totalorder %s20, 0
      %p84 = por %p82, %p83
      %s86 = sadd.s32 %s85, 1
      %p89 = scmp.eq.s32.totalorder %s14, 1
      %p90 = scmp.ne.s32.totalorder %s85, %s87
      %p91 = scmp.eq.s32.totalorder %s14, 0
      %p92 = por %p90, %p91
      %p93 = scmp.ne.s32.totalorder %s85, %s87
      %p94 = scmp.eq.s32.totalorder %s19, 1
      %p95 = por %p93, %p94
      %p96 = scmp.ne.s32.totalorder %s87, %s88
      %p97 = scmp.eq.s32.totalorder %s19, 0
      %p98 = por %p96, %p97
      %p99 = scmp.ne.s32.totalorder %s87, %s88
      %p100 = scmp.eq.s32.totalorder %s20, 1
      %p101 = por %p99, %p100
      %p103 = scmp.ne.s32.totalorder %s88, %s102
      %p104 = scmp.eq.s32.totalorder %s20, 0
      %p105 = por %p103, %p104
      %s106 = ssub.s32 %s14, %s21
      %p107 = scmp.eq.s32.totalorder %s106, 0
      %s109 = sadd.s32 %s108, 1
      %s110 = scalar_select %p107, %s108, %s109
      %p113 = pneg %p107
      %p114 = scmp.eq.s32.totalorder %s14, 1
      %p115 = por %p113, %p114
      %p116 = scmp.ne.s32.totalorder %s108, %s111
      %p117 = scmp.eq.s32.totalorder %s14, 0
      %p118 = por %p116, %p117
      %p119 = scmp.ne.s32.totalorder %s108, %s111
      %p120 = scmp.eq.s32.totalorder %s19, 1
      %p121 = por %p119, %p120
      %p122 = scmp.ne.s32.totalorder %s111, %s112
      %p123 = scmp.eq.s32.totalorder %s19, 0
      %p124 = por %p122, %p123
      %p125 = scmp.ne.s32.totalorder %s111, %s112
      %p126 = scmp.eq.s32.totalorder %s20, 1
      %p127 = por %p125, %p126
      %p129 = scmp.ne.s32.totalorder %s112, %s128
      %p130 = scmp.eq.s32.totalorder %s20, 0
      %p131 = por %p129, %p130
      %s132 = ssub.s32 %s14, %s21
      %p133 = scmp.eq.s32.totalorder %s132, 0
      %s135 = sadd.s32 %s134, 1
      %s136 = scalar_select %p133, %s134, %s135
      %p139 = pneg %p133
      %p140 = scmp.eq.s32.totalorder %s14, 1
      %p141 = por %p139, %p140
      %p142 = scmp.ne.s32.totalorder %s134, %s137
      %p143 = scmp.eq.s32.totalorder %s14, 0
      %p144 = por %p142, %p143
      %p145 = scmp.ne.s32.totalorder %s134, %s137
      %p146 = scmp.eq.s32.totalorder %s19, 1
      %p147 = por %p145, %p146
      %p148 = scmp.ne.s32.totalorder %s137, %s138
      %p149 = scmp.eq.s32.totalorder %s19, 0
      %p150 = por %p148, %p149
      %p151 = scmp.ne.s32.totalorder %s137, %s138
      %p152 = scmp.eq.s32.totalorder %s20, 1
      %p153 = por %p151, %p152
      %p155 = scmp.ne.s32.totalorder %s138, %s154
      %p156 = scmp.eq.s32.totalorder %s20, 0
      %p157 = por %p155, %p156
      %p158 = scmp.le.s32.totalorder 1, %s14
      %p159 = scmp.lt.s32.totalorder %s14, 3
      %p160 = pnand %p158, %p159
      %p161 = pneg %p160
      // Predicated region
      $region9: #{tpu_custom_call.1} parent=5 // pred_check
        _
      $region10: #{tpu_custom_call.1} parent=5 // pred_check_branch
        %163 = sbr.rel (%p160) target = $region12
      $region11: #{tpu_custom_call.1} parent=5 // pred_region
        %s164 = ssub.s32 %s14, 1
        // Predicated region
        $region13: #{tpu_custom_call.1} parent=11 // pred_check
          %p165 = pneg %p35
        $region14: #{tpu_custom_call.1} parent=11 // pred_check_branch
          %167 = sbr.rel (%p165) target = $region16
        $region15: #{tpu_custom_call.1} parent=11 // pred_region
          _
        $region16: #{tpu_custom_call.1} parent=11 // pred_fallthru
          _
        // Predicated region
        $region17: #{tpu_custom_call.1} parent=11 // pred_check
          %p168 = pneg %p56
        $region18: #{tpu_custom_call.1} parent=11 // pred_check_branch
          %170 = sbr.rel (%p168) target = $region20
        $region19: #{tpu_custom_call.1} parent=11 // pred_region
          _
        $region20: #{tpu_custom_call.1} parent=11 // pred_fallthru
          _
        // Predicated region
        $region21: #{tpu_custom_call.1} parent=11 // pred_check
          %p171 = pneg %p77
        $region22: #{tpu_custom_call.1} parent=11 // pred_check_branch
          %173 = sbr.rel (%p171) target = $region24
        $region23: #{tpu_custom_call.1} parent=11 // pred_region
          _
        $region24: #{tpu_custom_call.1} parent=11 // pred_fallthru
          _
        // Predicated region
        $region25: #{tpu_custom_call.1} parent=11 // pred_check
          %p174 = pneg %p98
        $region26: #{tpu_custom_call.1} parent=11 // pred_check_branch
          %176 = sbr.rel (%p174) target = $region28
        $region27: #{tpu_custom_call.1} parent=11 // pred_region
          _
        $region28: #{tpu_custom_call.1} parent=11 // pred_fallthru
          _
      $region12: #{tpu_custom_call.1} parent=5 // pred_fallthru
        _
      %p177 = scmp.lt.s32.totalorder %s14, 2
      // Predicated region
      $region29: #{tpu_custom_call.1} parent=5 // pred_check
        %p178 = pneg %p177
      $region30: #{tpu_custom_call.1} parent=5 // pred_check_branch
        %180 = sbr.rel (%p178) target = $region32
      $region31: #{tpu_custom_call.1} parent=5 // pred_region
        // Predicated region
        $region33: #{tpu_custom_call.1} parent=31 // pred_check
          %p181 = pneg %p118
        $region34: #{tpu_custom_call.1} parent=31 // pred_check_branch
          %183 = sbr.rel (%p181) target = $region36
        $region35: #{tpu_custom_call.1} parent=31 // pred_region
          %p184 = scmp.lt.s32.totalorder %s14, 1
          %s185 = scalar_select %p184, %s14, 1
          %s186 = smul.addr %s185, 10
          %s187 = smul.addr %s186, 8
          %s188 = scalar_lea.vmem %s4, %s187
        $region36: #{tpu_custom_call.1} parent=31 // pred_fallthru
          _
      $region32: #{tpu_custom_call.1} parent=5 // pred_fallthru
        _
      %p189 = scmp.le.s32.totalorder 1, %s14
      %p190 = scmp.lt.s32.totalorder %s14, 3
      %p191 = pnand %p189, %p190
      %p192 = pneg %p191
      // Predicated region
      $region37: #{tpu_custom_call.1} parent=5 // pred_check
        _
      $region38: #{tpu_custom_call.1} parent=5 // pred_check_branch
        %194 = sbr.rel (%p191) target = $region40
      $region39: #{tpu_custom_call.1} parent=5 // pred_region
        %s195 = ssub.s32 %s14, 1
        %p196 = pneg %p35
        %p197 = pneg %p32
        %p198 = pneg %p56
        %p199 = pneg %p53
        %p200 = pneg %p77
        %p201 = pneg %p74
        %p202 = pneg %p98
        %p203 = pneg %p95
        %p204 = scmp.lt.s32.totalorder %s19, 1
        %s205 = scalar_select %p204, %s19, 1
        %s206 = smul.addr %s205, 10
        %s207 = smul.addr %s206, 8
        %s208 = scalar_lea.vmem %s4, %s207
        %p209 = pneg %p124
        %p210 = pneg %p121
        %p211 = pneg %p150
        %p212 = pneg %p147
        %s213 = sand.u32 %s137, 1
        %s214 = scalar_lea.sflag [#allocation3], %s213
        %s215 = sand.u32 %s137, 1
        %s216 = smul.addr %s215, 16
        %s217 = scalar_lea.vmem [#allocation2], %s216
        %p218 = scmp.lt.s32.totalorder %s19, 1
        %s219 = scalar_select %p218, %s19, 1
        %s220 = smul.addr %s219, 10
        %s221 = smul.addr %s220, 8
        %s222 = scalar_lea.vmem %s4, %s221
        %v223 = vld [vmem:[%s0] sm:$0xff]
        %v224 = vld [vmem:[%s1] sm:$0xff]
        %v225 = vld [vmem:[%s1 + $0x8] sm:$0xff]
        %v226 = vld [vmem:[%s1 + $0x10] sm:$0xff]
        %v227 = vld [vmem:[%s1 + $0x18] sm:$0xff]
        %v228 = vld [vmem:[%s1 + $0x20] sm:$0xff]
        %v229 = vld [vmem:[%s1 + $0x28] sm:$0xff]
        %v230 = vld [vmem:[%s1 + $0x30] sm:$0xff]
        %v231 = vld [vmem:[%s1 + $0x38] sm:$0xff]
        %v232 = vld [vmem:[%s1 + $0x40] sm:$0xff]
        %vm233 = vcmask 588800
        %v235 = vsel %vm233, %v223, 0
        %237 = vmatprep.subr.mxu0 0.0
        %238 = vmatpush1.msra.mxu0 %v224
        %239 = vmatprep.subr.mxu0 0.0
        %240 = vmatpush1.msra.mxu0 %v225
        %241 = vmatprep.subr.mxu0 0.0
        %242 = vmatpush1.msra.mxu0 %v226
        %243 = vmatprep.subr.mxu0 0.0
        %244 = vmatpush1.msra.mxu0 %v227
        %245 = vmatprep.subr.mxu0 0.0
        %246 = vmatpush1.msra.mxu0 %v228
        %247 = vmatprep.subr.mxu0 0.0
        %248 = vmatpush1.msra.mxu0 %v229
        %249 = vmatprep.subr.mxu0 0.0
        %250 = vmatpush1.msra.mxu0 %v230
        %251 = vmatprep.subr.mxu0 0.0
        %252 = vmatpush1.msra.mxu0 %v231
        %253 = vmatprep.subr.mxu0 0.0
        %254 = vmatpush1.msra.mxu0 %v232
        %255 = vmatprep.subr.mxu0 0.0
        %256 = vmatpush1.msra.mxu0 0.0
        %257 = vmatprep.subr.mxu0 0.0
        %258 = vmatpush1.msra.mxu0 0.0
        %259 = vmatprep.subr.mxu0 0.0
        %260 = vmatpush1.msra.mxu0 0.0
        %261 = vmatprep.subr.mxu0 0.0
        %262 = vmatpush1.msra.mxu0 0.0
        %263 = vmatprep.subr.mxu0 0.0
        %264 = vmatpush1.msra.mxu0 0.0
        %265 = vmatprep.subr.mxu0 0.0
        %266 = vmatpush1.msra.mxu0 0.0
        %267 = vmatprep.subr.mxu0 0.0
        %268 = vmatpush1.msra.mxu0 0.0
        %269 = vmatprep.subr.mxu0 0.0
        %270 = vmatpush1.msra.mxu0 0.0
        %271 = vmatprep.subr.mxu0 0.0
        %272 = vmatpush1.msra.mxu0 0.0
        %273 = vmatprep.subr.mxu0 0.0
        %274 = vmatpush1.msra.mxu0 0.0
        %275 = vmatprep.subr.mxu0 0.0
        %276 = vmatpush1.msra.mxu0 0.0
        %277 = vmatprep.subr.mxu0 0.0
        %278 = vmatpush1.msra.mxu0 0.0
        %279 = vmatprep.subr.mxu0 0.0
        %280 = vmatpush1.msra.mxu0 0.0
        %281 = vmatprep.subr.mxu0 0.0
        %282 = vmatpush1.msra.mxu0 0.0
        %283 = vmatprep.subr.mxu0 0.0
        %284 = vmatpush1.msra.mxu0 0.0
        %285 = vmatprep.subr.mxu0 0.0
        %286 = vmatpush1.msra.mxu0 0.0
        %287 = vmatprep.subr.mxu0 0.0
        %288 = vmatpush1.msra.mxu0 0.0
        %289 = vmatprep.subr.mxu0 0.0
        %290 = vmatpush1.msra.mxu0 0.0
        %291 = vmatprep.subr.mxu0 0.0
        %292 = vmatpush1.msra.mxu0 0.0
        %293 = vmatprep.subr.mxu0 0.0
        %294 = vmatpush1.msra.mxu0 0.0
        %295 = vmatprep.subr.mxu0 0.0
        %296 = vmatpush1.msra.mxu0 0.0
        %297 = vmatprep.subr.mxu0 0.0
        %298 = vmatpush1.msra.mxu0 0.0
        %299 = vmatprep.subr.mxu0 0.0
        %300 = vmatpush1.msra.mxu0 0.0
        %301 = vmatprep.mubr.f32.mxu0 0.0
        %302 = vmatmul.mubr.f32.gmra.mrb[0].mxu0 %v235
        %v303 = vpop.f32.mrb[0].mxu0
        %v304 = vadd.f32 0.0, %v303
        %v305 = vpop.f32.mrb[0].mxu0
        %306 = vdwg.mxu0
        %v307 = vld [vmem:[%s2] sm:$0xff]
        %vm308 = vcmask 64512
        %v310 = vsel %vm308, %v304, 0
        %312 = vmatprep.subr.mxu0 0.0
        %313 = vmatpush1.msra.mxu0 %v307
        %314 = vmatprep.subr.mxu0 0.0
        %315 = vmatpush1.msra.mxu0 0.0
        %316 = vmatprep.subr.mxu0 0.0
        %317 = vmatpush1.msra.mxu0 0.0
        %318 = vmatprep.subr.mxu0 0.0
        %319 = vmatpush1.msra.mxu0 0.0
        %320 = vmatprep.subr.mxu0 0.0
        %321 = vmatpush1.msra.mxu0 0.0
        %322 = vmatprep.subr.mxu0 0.0
        %323 = vmatpush1.msra.mxu0 0.0
        %324 = vmatprep.subr.mxu0 0.0
        %325 = vmatpush1.msra.mxu0 0.0
        %326 = vmatprep.subr.mxu0 0.0
        %327 = vmatpush1.msra.mxu0 0.0
        %328 = vmatprep.subr.mxu0 0.0
        %329 = vmatpush1.msra.mxu0 0.0
        %330 = vmatprep.subr.mxu0 0.0
        %331 = vmatpush1.msra.mxu0 0.0
        %332 = vmatprep.subr.mxu0 0.0
        %333 = vmatpush1.msra.mxu0 0.0
        %334 = vmatprep.subr.mxu0 0.0
        %335 = vmatpush1.msra.mxu0 0.0
        %336 = vmatprep.subr.mxu0 0.0
        %337 = vmatpush1.msra.mxu0 0.0
        %338 = vmatprep.subr.mxu0 0.0
        %339 = vmatpush1.msra.mxu0 0.0
        %340 = vmatprep.subr.mxu0 0.0
        %341 = vmatpush1.msra.mxu0 0.0
        %342 = vmatprep.subr.mxu0 0.0
        %343 = vmatpush1.msra.mxu0 0.0
        %344 = vmatprep.subr.mxu0 0.0
        %345 = vmatpush1.msra.mxu0 0.0
        %346 = vmatprep.subr.mxu0 0.0
        %347 = vmatpush1.msra.mxu0 0.0
        %348 = vmatprep.subr.mxu0 0.0
        %349 = vmatpush1.msra.mxu0 0.0
        %350 = vmatprep.subr.mxu0 0.0
        %351 = vmatpush1.msra.mxu0 0.0
        %352 = vmatprep.subr.mxu0 0.0
        %353 = vmatpush1.msra.mxu0 0.0
        %354 = vmatprep.subr.mxu0 0.0
        %355 = vmatpush1.msra.mxu0 0.0
        %356 = vmatprep.subr.mxu0 0.0
        %357 = vmatpush1.msra.mxu0 0.0
        %358 = vmatprep.subr.mxu0 0.0
        %359 = vmatpush1.msra.mxu0 0.0
        %360 = vmatprep.subr.mxu0 0.0
        %361 = vmatpush1.msra.mxu0 0.0
        %362 = vmatprep.subr.mxu0 0.0
        %363 = vmatpush1.msra.mxu0 0.0
        %364 = vmatprep.subr.mxu0 0.0
        %365 = vmatpush1.msra.mxu0 0.0
        %366 = vmatprep.subr.mxu0 0.0
        %367 = vmatpush1.msra.mxu0 0.0
        %368 = vmatprep.subr.mxu0 0.0
        %369 = vmatpush1.msra.mxu0 0.0
        %370 = vmatprep.subr.mxu0 0.0
        %371 = vmatpush1.msra.mxu0 0.0
        %372 = vmatprep.subr.mxu0 0.0
        %373 = vmatpush1.msra.mxu0 0.0
        %374 = vmatprep.subr.mxu0 0.0
        %375 = vmatpush1.msra.mxu0 0.0
        %376 = vmatprep.mubr.f32.mxu0 0.0
        %377 = vmatmul.mubr.f32.gmra.mrb[0].mxu0 %v310
        %v378 = vpop.f32.mrb[0].mxu0
        %v379 = vadd.f32 0.0, %v378
        %v380 = vpop.f32.mrb[0].mxu0
        %381 = vdwg.mxu0
        %v382 = vld [vmem:[%s222] sm:$0xff]
        %v383 = vld [vmem:[%s222 + $0x8] sm:$0xff]
        %v384 = vld [vmem:[%s222 + $0x10] sm:$0xff]
        %v385 = vld [vmem:[%s222 + $0x18] sm:$0xff]
        %v386 = vld [vmem:[%s222 + $0x20] sm:$0xff]
        %v387 = vld [vmem:[%s222 + $0x28] sm:$0xff]
        %v388 = vld [vmem:[%s222 + $0x30] sm:$0xff]
        %v389 = vld [vmem:[%s222 + $0x38] sm:$0xff]
        %v390 = vld [vmem:[%s222 + $0x40] sm:$0xf]
        %v391 = vld [vmem:[%s222 + $0x48] sm:$0xf]
        %v392 = vld [vmem:[%s3] sm:$0xff]
        %394 = vset.pattern.permute.xlu0 0
        %395 = vperm.xlu0 %394, %v392
        %v396 = vpop.permute.xlu0 %395
        %vm398 = vcmask 293888
        %v400 = vsel %vm398, %v379, 0
        %vm402 = vcmask 1043456
        %v404 = vsel %vm402, %v390, 0
        %v407 = vsel %vm402, %v391, 0
        %409 = vmatprep.subr.mxu0 %v383
        %410 = vmatpush1.msra.mxu0 %v382
        %411 = vmatprep.subr.mxu0 %v385
        %412 = vmatpush1.msra.mxu0 %v384
        %413 = vmatprep.subr.mxu0 %v387
        %414 = vmatpush1.msra.mxu0 %v386
        %415 = vmatprep.subr.mxu0 %v389
        %416 = vmatpush1.msra.mxu0 %v388
        %417 = vmatprep.subr.mxu0 %v407
        %418 = vmatpush1.msra.mxu0 %v404
        %419 = vmatprep.subr.mxu0 0.0
        %420 = vmatpush1.msra.mxu0 0.0
        %421 = vmatprep.subr.mxu0 0.0
        %422 = vmatpush1.msra.mxu0 0.0
        %423 = vmatprep.subr.mxu0 0.0
        %424 = vmatpush1.msra.mxu0 0.0
        %425 = vmatprep.subr.mxu0 0.0
        %426 = vmatpush1.msra.mxu0 0.0
        %427 = vmatprep.subr.mxu0 0.0
        %428 = vmatpush1.msra.mxu0 0.0
        %429 = vmatprep.subr.mxu0 0.0
        %430 = vmatpush1.msra.mxu0 0.0
        %431 = vmatprep.subr.mxu0 0.0
        %432 = vmatpush1.msra.mxu0 0.0
        %433 = vmatprep.subr.mxu0 0.0
        %434 = vmatpush1.msra.mxu0 0.0
        %435 = vmatprep.subr.mxu0 0.0
        %436 = vmatpush1.msra.mxu0 0.0
        %437 = vmatprep.subr.mxu0 0.0
        %438 = vmatpush1.msra.mxu0 0.0
        %439 = vmatprep.subr.mxu0 0.0
        %440 = vmatpush1.msra.mxu0 0.0
        %441 = vmatprep.subr.mxu0 0.0
        %442 = vmatpush1.msra.mxu0 0.0
        %443 = vmatprep.subr.mxu0 0.0
        %444 = vmatpush1.msra.mxu0 0.0
        %445 = vmatprep.subr.mxu0 0.0
        %446 = vmatpush1.msra.mxu0 0.0
        %447 = vmatprep.subr.mxu0 0.0
        %448 = vmatpush1.msra.mxu0 0.0
        %449 = vmatprep.subr.mxu0 0.0
        %450 = vmatpush1.msra.mxu0 0.0
        %451 = vmatprep.subr.mxu0 0.0
        %452 = vmatpush1.msra.mxu0 0.0
        %453 = vmatprep.subr.mxu0 0.0
        %454 = vmatpush1.msra.mxu0 0.0
        %455 = vmatprep.subr.mxu0 0.0
        %456 = vmatpush1.msra.mxu0 0.0
        %457 = vmatprep.subr.mxu0 0.0
        %458 = vmatpush1.msra.mxu0 0.0
        %459 = vmatprep.subr.mxu0 0.0
        %460 = vmatpush1.msra.mxu0 0.0
        %461 = vmatprep.subr.mxu0 0.0
        %462 = vmatpush1.msra.mxu0 0.0
        %463 = vmatprep.subr.mxu0 0.0
        %464 = vmatpush1.msra.mxu0 0.0
        %465 = vmatprep.subr.mxu0 0.0
        %466 = vmatpush1.msra.mxu0 0.0
        %467 = vmatprep.subr.mxu0 0.0
        %468 = vmatpush1.msra.mxu0 0.0
        %469 = vmatprep.subr.mxu0 0.0
        %470 = vmatpush1.msra.mxu0 0.0
        %471 = vmatprep.subr.mxu0 0.0
        %472 = vmatpush1.msra.mxu0 0.0
        %473 = vmatprep.mubr.f32.mxu0 0.0
        %474 = vmatmul.mubr.f32.gmra.mrb[0].mxu0 %v400
        %v475 = vpop.f32.mrb[0].mxu0
        %v476 = vadd.f32 %v396, %v475
        %v477 = vpop.f32.mrb[0].mxu0
        %v478 = vadd.f32 %v396, %v477
        %479 = vdwg.mxu0
        %480 = vst [vmem:[%s217] sm:$0xff] %v476
        %481 = vst [vmem:[%s217 + $0x8] sm:$0xff] %v478
        %s482 = sand.u32 %s137, 1
        %s483 = scalar_lea.sflag [#allocation3], %s482
        %s484 = sand.u32 %s137, 1
        %s485 = smul.addr %s484, 16
        %s486 = scalar_lea.vmem [#allocation2], %s485
        // Predicated region
        $region41: #{tpu_custom_call.1} parent=39 // pred_check
          %p487 = pneg %p147
        $region42: #{tpu_custom_call.1} parent=39 // pred_check_branch
          %489 = sbr.rel (%p487) target = $region44
        $region43: #{tpu_custom_call.1} parent=39 // pred_region
          %s491 = ssub.s32 256, 256
          %492 = vsyncadd %s483, %s491
          %s493 = smul.addr %s19, 2
          %s494 = smul.addr %s493, 128
          %s495 = scalar_lea.hbm %s5, %s494
          %s497 = sshll.u32 %s486, 4
          %s498 = int_to_ptr.vmem [resolvable:$true] %s497
          %500 = dma.vmem_to_hbm [thread:$0]  %s498, 256, %s495, %s483
        $region44: #{tpu_custom_call.1} parent=39 // pred_fallthru
          _
      $region40: #{tpu_custom_call.1} parent=5 // pred_fallthru
        _
      %p501 = scmp.le.s32.totalorder 2, %s14
      // Predicated region
      $region45: #{tpu_custom_call.1} parent=5 // pred_check
        %p502 = pneg %p501
      $region46: #{tpu_custom_call.1} parent=5 // pred_check_branch
        %504 = sbr.rel (%p502) target = $region48
      $region47: #{tpu_custom_call.1} parent=5 // pred_region
        %s505 = ssub.s32 %s14, 2
        // Predicated region
        $region49: #{tpu_custom_call.1} parent=47 // pred_check
          %p506 = pneg %p153
        $region50: #{tpu_custom_call.1} parent=47 // pred_check_branch
          %508 = sbr.rel (%p506) target = $region52
        $region51: #{tpu_custom_call.1} parent=47 // pred_region
          %s509 = sand.u32 %s138, 1
          %s510 = scalar_lea.sflag [#allocation3], %s509
          %s511 = sand.u32 %s138, 1
          %s512 = smul.addr %s511, 16
          %s513 = scalar_lea.vmem [#allocation2], %s512
          %514 = dma.done %s510, 256
        $region52: #{tpu_custom_call.1} parent=47 // pred_fallthru
          _
      $region48: #{tpu_custom_call.1} parent=5 // pred_fallthru
        _
    $region6: #{tpu_custom_call.1} parent=1 // loop_footer
      %s18 = sadd.s32 1, %s14
    $region7: #{tpu_custom_call.1} parent=1 // loop_footer_branch
      %13 = sbr.rel target = $region3
    $region8: #{tpu_custom_call.1} parent=1 // loop_exit
      _
    %515 = vsyncpa [#allocation3], 1
    %s516 = scalar_lea.sflag [#allocation3], 1
    %517 = vsyncpa %s516, 1

</llo_original>
